<compile_context>
chip_gen: v6e
topology: v6e:2x2x1
jax: 0.10.0
libtpu: 0.0.40
codegen_flags: <defaults>
</compile_context>

<pallas_src>
import jax
import jax.numpy as jnp
from jax import lax
from jax.experimental import pallas as pl
from jax.experimental.pallas import tpu as pltpu


def _hardswish(x):
    # x * relu6(x + 3) / 6  (exact PyTorch nn.Hardswish semantics)
    return x * jnp.clip(x + 3.0, 0.0, 6.0) * (1.0 / 6.0)


def _round_up(n, m):
    return ((n + m - 1) // m) * m


def critic_q1_kernel(x_ref, a_ref,
                     w1s_ref, w1a_ref, b1_ref,
                     w2_ref, b2_ref,
                     w3_ref, b3_ref,
                     w4_ref, b4_ref,
                     out_ref):
    """All activations are (mid, TB): features on sublanes, batch on lanes."""
    f32 = jnp.float32
    dn_last = (((1,), (1,)), ((), ()))   # contract last dims of both operands

    # --- net_sa layer 1:  h^T = W1s^T x^T + W1a^T a^T + b1   -> (mid, TB) ---
    h = (lax.dot_general(w1s_ref[...], x_ref[...], dn_last,
                         preferred_element_type=f32)
         + lax.dot_general(w1a_ref[...], a_ref[...], dn_last,
                           preferred_element_type=f32)
         + b1_ref[...])
    h = jnp.maximum(h, 0.0)

    # --- net_sa layer 2: (mid, mid) @ (mid, TB) + ReLU -----------------------
    h = jnp.dot(w2_ref[...], h, preferred_element_type=f32) + b2_ref[...]
    h = jnp.maximum(h, 0.0)

    # --- net_q1 layer 1: (mid, mid) @ (mid, TB) + Hardswish ------------------
    h = jnp.dot(w3_ref[...], h, preferred_element_type=f32) + b3_ref[...]
    h = _hardswish(h)

    # --- net_q1 layer 2: (1, mid) @ (mid, TB) -> lane-dense (1, TB) ----------
    q = jnp.dot(w4_ref[...], h, preferred_element_type=f32) + b4_ref[0, 0]
    out_ref[...] = q.reshape(out_ref.shape).astype(out_ref.dtype)


def _choose_tile(batch, block_batch, *, min_blocks=2, min_tile=512):
    tb = min(_round_up(block_batch, 8), _round_up(batch, 8))
    # Guarantee >= min_blocks grid steps when the batch is big enough, so the
    # "parallel" batch axis can be split across v7x's two TensorCores.
    if batch >= min_blocks * min_tile:
        tb = min(tb, _round_up(-(-batch // min_blocks), 8))
    return tb


def critic_twin_q1(state, action, params, *, block_batch=4096, input_dtype=None):
    """CriticTwin.forward: (B, state_dim), (B, action_dim) -> (B, 1) q1 value."""
    w1, b1, w2, b2, w3, b3, w4, b4 = params
    B, state_dim = state.shape
    action_dim = action.shape[1]
    mid_dim = w1.shape[1]

    tb = _choose_tile(B, block_batch)
    b_pad = _round_up(B, tb)
    if b_pad != B:
        pad = b_pad - B
        state = jnp.pad(state, ((0, pad), (0, 0)))
        action = jnp.pad(action, ((0, pad), (0, 0)))
    grid_b = b_pad // tb

    # One-time tiny parameter reshuffles (a few KiB): split w1 into its state /
    # action rows and pre-transpose everything for the (mid, TB) orientation.
    w1s_t = w1[:state_dim].T            # (mid, state_dim)
    w1a_t = w1[state_dim:].T            # (mid, action_dim)
    w2_t = w2.T                         # (mid_out, mid_in)
    w3_t = w3.T
    w4_row = w4.T                       # (1, mid)
    b1_c = b1.reshape(mid_dim, 1).astype(jnp.float32)
    b2_c = b2.reshape(mid_dim, 1).astype(jnp.float32)
    b3_c = b3.reshape(mid_dim, 1).astype(jnp.float32)
    b4_s = b4.reshape(1, 1).astype(jnp.float32)     # scalar, lives in SMEM

    if input_dtype is not None:
        # bf16 input path for v6e/v7x: halves state/action DMA, native MXU rate.
        state = state.astype(input_dtype)
        action = action.astype(input_dtype)
        w1s_t = w1s_t.astype(input_dtype)
        w1a_t = w1a_t.astype(input_dtype)

    const2d = lambda i: (0, 0)          # weights/biases stay resident in VMEM

    # Advisory cost + VMEM budget (lane-padded tiles, double-buffered I/O).
    lane = 128
    in_item = jnp.dtype(state.dtype).itemsize
    flops = 2 * B * mid_dim * (state_dim + action_dim + 2 * mid_dim + 1)
    param_bytes = sum(int(p.size) * 4 for p in params)
    bytes_accessed = int(B * (state_dim + action_dim) * in_item + B * 4 + param_bytes)
    vmem_est = (2 * tb * (_round_up(state_dim, lane) + _round_up(action_dim, lane)) * in_item
                + 2 * 8 * _round_up(tb, lane) * 4                       # output blocks
                + 6 * _round_up(mid_dim, 8) * _round_up(tb, lane) * 4   # live activations
                + (2 << 20))                                            # weights + slack
    vmem_limit = int(min(max(vmem_est, 16 << 20), 48 << 20))

    out = pl.pallas_call(
        critic_q1_kernel,
        out_shape=jax.ShapeDtypeStruct((grid_b, 1, tb), jnp.float32),
        grid=(grid_b,),
        in_specs=[
            pl.BlockSpec((tb, state_dim), lambda i: (i, 0)),
            pl.BlockSpec((tb, action_dim), lambda i: (i, 0)),
            pl.BlockSpec((mid_dim, state_dim), const2d),
            pl.BlockSpec((mid_dim, action_dim), const2d),
            pl.BlockSpec((mid_dim, 1), const2d),
            pl.BlockSpec((mid_dim, mid_dim), const2d),
            pl.BlockSpec((mid_dim, 1), const2d),
            pl.BlockSpec((mid_dim, mid_dim), const2d),
            pl.BlockSpec((mid_dim, 1), const2d),
            pl.BlockSpec((1, mid_dim), const2d),
            pl.BlockSpec(memory_space=pltpu.MemorySpace.SMEM),   # b4 scalar
        ],
        out_specs=pl.BlockSpec((1, 1, tb), lambda i: (i, 0, 0)),
        compiler_params=pltpu.CompilerParams(
            dimension_semantics=("parallel",),
            vmem_limit_bytes=vmem_limit),
        cost_estimate=pl.CostEstimate(flops=int(flops), transcendentals=0,
                                      bytes_accessed=bytes_accessed),
    )(state, action, w1s_t, w1a_t, b1_c, w2_t, b2_c, w3_t, b3_c, w4_row, b4_s)

    # (G, 1, TB) lane-dense slab -> (B, 1), dropping the padded rows.
    return out.reshape(b_pad, 1)[:B]


def init_params(key, state_dim, mid_dim, action_dim):
    """Deterministic synthetic parameters: weights (in, out), biases (1, out)."""
    in_dim = state_dim + action_dim
    dims = [(in_dim, mid_dim), (mid_dim, mid_dim), (mid_dim, mid_dim), (mid_dim, 1)]
    params = []
    for i, (din, dout) in enumerate(dims):
        kw, kb = jax.random.split(jax.random.fold_in(key, i))
        scale = 1.0 / jnp.sqrt(din)
        w = jax.random.uniform(kw, (din, dout), jnp.float32, -scale, scale)
        b = jax.random.uniform(kb, (1, dout), jnp.float32, -scale, scale)
        params += [w, b]
    return tuple(params)


def reference_forward(state, action, params):
    """Pure-JAX reference mirroring PyTorch CriticTwin.forward (q1 head)."""
    w1, b1, w2, b2, w3, b3, w4, b4 = params
    h = jnp.concatenate((state, action), axis=1)
    h = jnp.maximum(h @ w1 + b1, 0.0)
    h = jnp.maximum(h @ w2 + b2, 0.0)
    h = h @ w3 + b3
    h = _hardswish(h)
    return h @ w4 + b4


if __name__ == "__main__":
    state_dim, mid_dim, action_dim = 12, 32, 4
    batch = 12   # deliberately not a multiple of the batch tile -> exercises padding

    key = jax.random.PRNGKey(0)
    kx, ka, kp = jax.random.split(key, 3)
    state = jax.random.normal(kx, (batch, state_dim), jnp.float32)
    action = jax.random.normal(ka, (batch, action_dim), jnp.float32)
    params = init_params(kp, state_dim, mid_dim, action_dim)

    # Small tile so the demo runs 2 grid steps; production default is 4096.
    q1 = critic_twin_q1(state, action, params, block_batch=8)
    q1 = jax.block_until_ready(q1)

    ref = reference_forward(state, action, params)
    assert q1.shape == (batch, 1)
    # Both the kernel and the XLA reference run f32 matmuls at the MXU's
    # default (bf16-pass) precision, so allow a slightly looser tolerance.
    assert jnp.allclose(q1, ref, atol=1e-2, rtol=1e-2), "mismatch vs reference"

    print("KERNEL_OK")
</pallas_src>

<mosaic_0001>
module attributes {stable_mosaic.version = 11 : i64} {
  func.func @critic_q1_kernel(%arg0: i32, %arg1: memref<8x12xf32, #tpu.memory_space<vmem>>, %arg2: memref<8x4xf32, #tpu.memory_space<vmem>>, %arg3: memref<32x12xf32, #tpu.memory_space<vmem>>, %arg4: memref<32x4xf32, #tpu.memory_space<vmem>>, %arg5: memref<32x1xf32, #tpu.memory_space<vmem>>, %arg6: memref<32x32xf32, #tpu.memory_space<vmem>>, %arg7: memref<32x1xf32, #tpu.memory_space<vmem>>, %arg8: memref<32x32xf32, #tpu.memory_space<vmem>>, %arg9: memref<32x1xf32, #tpu.memory_space<vmem>>, %arg10: memref<1x32xf32, #tpu.memory_space<vmem>>, %arg11: memref<1x1xf32, #tpu.memory_space<smem>>, %arg12: memref<1x1x8xf32, #tpu.memory_space<vmem>>) attributes {dimension_semantics = [#tpu.dimension_semantics<parallel>], iteration_bounds = array<i64: 2>, scalar_prefetch = 0 : i64, scratch_operands = 0 : i64, tpu.core_type = #tpu.core_type<tc>, window_params = [{transform_indices = @transform_0, window_bounds = array<i64: 8, 12>}, {transform_indices = @transform_1, window_bounds = array<i64: 8, 4>}, {pipeline_mode = #tpu.pipeline_mode<synchronous>, transform_indices = @transform_2, window_bounds = array<i64: 32, 12>}, {pipeline_mode = #tpu.pipeline_mode<synchronous>, transform_indices = @transform_3, window_bounds = array<i64: 32, 4>}, {pipeline_mode = #tpu.pipeline_mode<synchronous>, transform_indices = @transform_4, window_bounds = array<i64: 32, 1>}, {pipeline_mode = #tpu.pipeline_mode<synchronous>, transform_indices = @transform_5, window_bounds = array<i64: 32, 32>}, {pipeline_mode = #tpu.pipeline_mode<synchronous>, transform_indices = @transform_6, window_bounds = array<i64: 32, 1>}, {pipeline_mode = #tpu.pipeline_mode<synchronous>, transform_indices = @transform_7, window_bounds = array<i64: 32, 32>}, {pipeline_mode = #tpu.pipeline_mode<synchronous>, transform_indices = @transform_8, window_bounds = array<i64: 32, 1>}, {pipeline_mode = #tpu.pipeline_mode<synchronous>, transform_indices = @transform_9, window_bounds = array<i64: 1, 32>}, {transform_indices = @transform_10, window_bounds = array<i64: 1, 1>}, {transform_indices = @transform_11, window_bounds = array<i64: 1, 1, 8>}]} {
    %c0 = arith.constant 0 : index
    %c0_0 = arith.constant 0 : index
    %0 = vector.load %arg3[%c0, %c0_0] : memref<32x12xf32, #tpu.memory_space<vmem>>, vector<32x12xf32>
    %c0_1 = arith.constant 0 : index
    %c0_2 = arith.constant 0 : index
    %1 = vector.load %arg1[%c0_1, %c0_2] : memref<8x12xf32, #tpu.memory_space<vmem>>, vector<8x12xf32>
    %cst = arith.constant dense<0.000000e+00> : vector<32x8xf32>
    %2 = tpu.matmul %0, %1, %cst {dimension_numbers = #tpu.dot_dimension_numbers<[1], [1], [0], [0], [0, 0, 1, 0], [], []>} : vector<32x12xf32>, vector<8x12xf32>, vector<32x8xf32> -> vector<32x8xf32>
    %c0_3 = arith.constant 0 : index
    %c0_4 = arith.constant 0 : index
    %3 = vector.load %arg4[%c0_3, %c0_4] : memref<32x4xf32, #tpu.memory_space<vmem>>, vector<32x4xf32>
    %c0_5 = arith.constant 0 : index
    %c0_6 = arith.constant 0 : index
    %4 = vector.load %arg2[%c0_5, %c0_6] : memref<8x4xf32, #tpu.memory_space<vmem>>, vector<8x4xf32>
    %cst_7 = arith.constant dense<0.000000e+00> : vector<32x8xf32>
    %5 = tpu.matmul %3, %4, %cst_7 {dimension_numbers = #tpu.dot_dimension_numbers<[1], [1], [0], [0], [0, 0, 1, 0], [], []>} : vector<32x4xf32>, vector<8x4xf32>, vector<32x8xf32> -> vector<32x8xf32>
    %6 = arith.addf %2, %5 : vector<32x8xf32>
    %c0_8 = arith.constant 0 : index
    %c0_9 = arith.constant 0 : index
    %7 = vector.load %arg5[%c0_8, %c0_9] : memref<32x1xf32, #tpu.memory_space<vmem>>, vector<32x1xf32>
    %8 = vector.broadcast %7 : vector<32x1xf32> to vector<32x8xf32>
    %9 = arith.addf %6, %8 : vector<32x8xf32>
    %cst_10 = arith.constant 0.000000e+00 : f32
    %10 = vector.broadcast %cst_10 : f32 to vector<32x8xf32>
    %11 = arith.maximumf %9, %10 : vector<32x8xf32>
    %c0_11 = arith.constant 0 : index
    %c0_12 = arith.constant 0 : index
    %12 = vector.load %arg6[%c0_11, %c0_12] : memref<32x32xf32, #tpu.memory_space<vmem>>, vector<32x32xf32>
    %cst_13 = arith.constant dense<0.000000e+00> : vector<32x8xf32>
    %13 = tpu.matmul %12, %11, %cst_13 {dimension_numbers = #tpu.dot_dimension_numbers<[1], [0], [0], [1], [0, 0, 1, 1], [], []>} : vector<32x32xf32>, vector<32x8xf32>, vector<32x8xf32> -> vector<32x8xf32>
    %c0_14 = arith.constant 0 : index
    %c0_15 = arith.constant 0 : index
    %14 = vector.load %arg7[%c0_14, %c0_15] : memref<32x1xf32, #tpu.memory_space<vmem>>, vector<32x1xf32>
    %15 = vector.broadcast %14 : vector<32x1xf32> to vector<32x8xf32>
    %16 = arith.addf %13, %15 : vector<32x8xf32>
    %cst_16 = arith.constant 0.000000e+00 : f32
    %17 = vector.broadcast %cst_16 : f32 to vector<32x8xf32>
    %18 = arith.maximumf %16, %17 : vector<32x8xf32>
    %c0_17 = arith.constant 0 : index
    %c0_18 = arith.constant 0 : index
    %19 = vector.load %arg8[%c0_17, %c0_18] : memref<32x32xf32, #tpu.memory_space<vmem>>, vector<32x32xf32>
    %cst_19 = arith.constant dense<0.000000e+00> : vector<32x8xf32>
    %20 = tpu.matmul %19, %18, %cst_19 {dimension_numbers = #tpu.dot_dimension_numbers<[1], [0], [0], [1], [0, 0, 1, 1], [], []>} : vector<32x32xf32>, vector<32x8xf32>, vector<32x8xf32> -> vector<32x8xf32>
    %c0_20 = arith.constant 0 : index
    %c0_21 = arith.constant 0 : index
    %21 = vector.load %arg9[%c0_20, %c0_21] : memref<32x1xf32, #tpu.memory_space<vmem>>, vector<32x1xf32>
    %22 = vector.broadcast %21 : vector<32x1xf32> to vector<32x8xf32>
    %23 = arith.addf %20, %22 : vector<32x8xf32>
    %cst_22 = arith.constant 3.000000e+00 : f32
    %24 = vector.broadcast %cst_22 : f32 to vector<32x8xf32>
    %25 = arith.addf %23, %24 : vector<32x8xf32>
    %cst_23 = arith.constant 0.000000e+00 : f32
    %cst_24 = arith.constant 6.000000e+00 : f32
    %26 = vector.broadcast %cst_23 : f32 to vector<32x8xf32>
    %27 = arith.maximumf %26, %25 : vector<32x8xf32>
    %28 = vector.broadcast %cst_24 : f32 to vector<32x8xf32>
    %29 = arith.minimumf %28, %27 : vector<32x8xf32>
    %30 = arith.mulf %23, %29 : vector<32x8xf32>
    %cst_25 = arith.constant 0.166666672 : f32
    %31 = vector.broadcast %cst_25 : f32 to vector<32x8xf32>
    %32 = arith.mulf %30, %31 : vector<32x8xf32>
    %c0_26 = arith.constant 0 : index
    %c0_27 = arith.constant 0 : index
    %33 = vector.load %arg10[%c0_26, %c0_27] : memref<1x32xf32, #tpu.memory_space<vmem>>, vector<1x32xf32>
    %cst_28 = arith.constant dense<0.000000e+00> : vector<1x8xf32>
    %34 = tpu.matmul %33, %32, %cst_28 {dimension_numbers = #tpu.dot_dimension_numbers<[1], [0], [0], [1], [0, 0, 1, 1], [], []>} : vector<1x32xf32>, vector<32x8xf32>, vector<1x8xf32> -> vector<1x8xf32>
    %c0_29 = arith.constant 0 : index
    %c0_30 = arith.constant 0 : index
    %35 = memref.load %arg11[%c0_29, %c0_30] : memref<1x1xf32, #tpu.memory_space<smem>>
    %36 = vector.broadcast %35 : f32 to vector<1x8xf32>
    %37 = arith.addf %34, %36 : vector<1x8xf32>
    %38 = vector.shape_cast %37 : vector<1x8xf32> to vector<1x1x8xf32>
    %c0_31 = arith.constant 0 : index
    %c0_32 = arith.constant 0 : index
    %c0_33 = arith.constant 0 : index
    %39 = vector.load %arg12[%c0_31, %c0_32, %c0_33] : memref<1x1x8xf32, #tpu.memory_space<vmem>>, vector<1x1x8xf32>
    tpu.vector_store %arg12[%c0_31, %c0_32, %c0_33], %38 {strides = array<i32>} : memref<1x1x8xf32, #tpu.memory_space<vmem>>, vector<1x1x8xf32>,
    return
  }
  func.func @transform_0(%arg0: i32) -> (i32, i32) {
    %c0_i32 = arith.constant 0 : i32
    %c0_i32_0 = arith.constant 0 : i32
    return %arg0, %c0_i32 : i32, i32
  }
  func.func @transform_1(%arg0: i32) -> (i32, i32) {
    %c0_i32 = arith.constant 0 : i32
    %c0_i32_0 = arith.constant 0 : i32
    return %arg0, %c0_i32 : i32, i32
  }
  func.func @transform_2(%arg0: i32) -> (i32, i32) {
    %c0_i32 = arith.constant 0 : i32
    %c0_i32_0 = arith.constant 0 : i32
    %c0_i32_1 = arith.constant 0 : i32
    return %c0_i32, %c0_i32_0 : i32, i32
  }
  func.func @transform_3(%arg0: i32) -> (i32, i32) {
    %c0_i32 = arith.constant 0 : i32
    %c0_i32_0 = arith.constant 0 : i32
    %c0_i32_1 = arith.constant 0 : i32
    return %c0_i32, %c0_i32_0 : i32, i32
  }
  func.func @transform_4(%arg0: i32) -> (i32, i32) {
    %c0_i32 = arith.constant 0 : i32
    %c0_i32_0 = arith.constant 0 : i32
    %c0_i32_1 = arith.constant 0 : i32
    return %c0_i32, %c0_i32_0 : i32, i32
  }
  func.func @transform_5(%arg0: i32) -> (i32, i32) {
    %c0_i32 = arith.constant 0 : i32
    %c0_i32_0 = arith.constant 0 : i32
    %c0_i32_1 = arith.constant 0 : i32
    return %c0_i32, %c0_i32_0 : i32, i32
  }
  func.func @transform_6(%arg0: i32) -> (i32, i32) {
    %c0_i32 = arith.constant 0 : i32
    %c0_i32_0 = arith.constant 0 : i32
    %c0_i32_1 = arith.constant 0 : i32
    return %c0_i32, %c0_i32_0 : i32, i32
  }
  func.func @transform_7(%arg0: i32) -> (i32, i32) {
    %c0_i32 = arith.constant 0 : i32
    %c0_i32_0 = arith.constant 0 : i32
    %c0_i32_1 = arith.constant 0 : i32
    return %c0_i32, %c0_i32_0 : i32, i32
  }
  func.func @transform_8(%arg0: i32) -> (i32, i32) {
    %c0_i32 = arith.constant 0 : i32
    %c0_i32_0 = arith.constant 0 : i32
    %c0_i32_1 = arith.constant 0 : i32
    return %c0_i32, %c0_i32_0 : i32, i32
  }
  func.func @transform_9(%arg0: i32) -> (i32, i32) {
    %c0_i32 = arith.constant 0 : i32
    %c0_i32_0 = arith.constant 0 : i32
    %c0_i32_1 = arith.constant 0 : i32
    return %c0_i32, %c0_i32_0 : i32, i32
  }
  func.func @transform_10(%arg0: i32) -> (i32, i32) {
    %c0_i32 = arith.constant 0 : i32
    %c0_i32_0 = arith.constant 0 : i32
    %c0_i32_1 = arith.constant 0 : i32
    return %c0_i32, %c0_i32_0 : i32, i32
  }
  func.func @transform_11(%arg0: i32) -> (i32, i32, i32) {
    %c0_i32 = arith.constant 0 : i32
    %c0_i32_0 = arith.constant 0 : i32
    %c0_i32_1 = arith.constant 0 : i32
    return %arg0, %c0_i32, %c0_i32_0 : i32, i32, i32
  }
}

</mosaic_0001>

<llo_original>
// kernel: tpu_custom_call.1
$region0: #{tpu_custom_call.1}
  #allocation0 [shape = 'u32[]', space=smem, size = 0x4, offset = 0x4, fixed_abs, tag = 'smem constant byte address 0x4 - core index']
  #allocation1 [shape = 'u32[144,128]{1,0:T(1,128)}', space=vmem, size = 0x12000, scoped, tag = 'internal scratch']
  #allocation2 [shape = 'f32[1,1]{1,0:T(1,128)S(6)}', space=smem, size = 0x200, scoped, tag = 'scoped memory for tpu_custom_call.1']
  %s0 = inlined_call_operand.vmem [shape: f32[16,12], index: 0, kind: input, shape index: {}]
  %s1 = inlined_call_operand.vmem [shape: f32[16,4], index: 1, kind: input, shape index: {}]
  %s2 = inlined_call_operand.vmem [shape: f32[32,12], index: 2, kind: input, shape index: {}]
  %s3 = inlined_call_operand.vmem [shape: f32[32,4], index: 3, kind: input, shape index: {}]
  %s4 = inlined_call_operand.vmem [shape: f32[32,1], index: 4, kind: input, shape index: {}]
  %s5 = inlined_call_operand.vmem [shape: f32[32,32], index: 5, kind: input, shape index: {}]
  %s6 = inlined_call_operand.vmem [shape: f32[32,1], index: 6, kind: input, shape index: {}]
  %s7 = inlined_call_operand.vmem [shape: f32[32,32], index: 7, kind: input, shape index: {}]
  %s8 = inlined_call_operand.vmem [shape: f32[32,1], index: 8, kind: input, shape index: {}]
  %s9 = inlined_call_operand.vmem [shape: f32[1,32], index: 9, kind: input, shape index: {}]
  %s10 = inlined_call_operand.<no memory space> [shape: f32[1,1], index: 10, kind: input, shape index: {}]
  %s11 = inlined_call_operand.hbm [shape: f32[2,1,8], index: 11, kind: output, shape index: {}]
  %s12 = sld [smem:[#allocation0]]
  $region77: #{tpu_custom_call.1} parent=0
    _
  %s14 = ssub.s32 1, %s12
  %s15 = scalar_select 0, %s14, %s12
  %16 = sst [smem:[#allocation2]] %s10
  $region1: #{tpu_custom_call.1} parent=0
    #allocation3 [shape = 'u8[1024]{0}', space=vmem, size = 0x400, scoped, tag = 'output window, operand 0']
    #allocation4 [shape = 's32[2]{0}', space=sflag, size = 0x8, scoped, tag = 'scoped memory for tpu_custom_call.1']
    %17 = vsyncpa [#allocation4], 0
    %s18 = scalar_lea.sflag [#allocation4], 1
    %19 = vsyncpa %s18, 0
    loop: start=0, step=1, limit=4
    $region2: #{tpu_custom_call.1} parent=1 // loop_pre_header
      _
    $region3: #{tpu_custom_call.1} parent=1 // loop_header
      %s21 = sphi 0, %s25
      %p22 = scmp.ge.s32.totalorder %s21, 4
      %s31 = sphi 0, %s33
      %s34 = sphi 0, %s31
      %s35 = sphi 0, %s34
      %s51 = sphi 0, %s35
      %s57 = sphi 0, %s59
      %s60 = sphi 0, %s57
      %s61 = sphi 0, %s60
      %s77 = sphi 0, %s61
      %s81 = sphi 0, %s81
      %s83 = sphi 0, %s81
      %s84 = sphi 0, %s83
      %s98 = sphi 0, %s84
      %s102 = sphi 0, %s102
      %s104 = sphi 0, %s102
      %s105 = sphi 0, %s104
      %s119 = sphi 0, %s105
      %s123 = sphi 0, %s123
      %s125 = sphi 0, %s123
      %s126 = sphi 0, %s125
      %s140 = sphi 0, %s126
      %s144 = sphi 0, %s144
      %s146 = sphi 0, %s144
      %s147 = sphi 0, %s146
      %s161 = sphi 0, %s147
      %s165 = sphi 0, %s165
      %s167 = sphi 0, %s165
      %s168 = sphi 0, %s167
      %s182 = sphi 0, %s168
      %s186 = sphi 0, %s186
      %s188 = sphi 0, %s186
      %s189 = sphi 0, %s188
      %s203 = sphi 0, %s189
      %s207 = sphi 0, %s207
      %s209 = sphi 0, %s207
      %s210 = sphi 0, %s209
      %s224 = sphi 0, %s210
      %s228 = sphi 0, %s228
      %s230 = sphi 0, %s228
      %s231 = sphi 0, %s230
      %s245 = sphi 0, %s231
      %s249 = sphi 0, %s249
      %s251 = sphi 0, %s249
      %s252 = sphi 0, %s251
      %s266 = sphi 0, %s252
      %s272 = sphi 0, %s274
      %s275 = sphi 0, %s272
      %s276 = sphi 0, %s275
      %s292 = sphi 0, %s276
    $region4: #{tpu_custom_call.1} parent=1 // loop_header_branch
      %24 = sbr.rel (%p22) target = $region8
    $region5: #{tpu_custom_call.1} parent=1 // loop_body
      %s26 = ssub.s32 %s21, 1
      %s27 = ssub.s32 %s21, 2
      %s28 = sadd.s32 %s21, 1
      %s29 = ssub.s32 %s21, %s28
      %p30 = scmp.eq.s32.totalorder %s29, 0
      %s32 = sadd.s32 %s31, 1
      %s33 = scalar_select %p30, %s31, %s32
      %p36 = pneg %p30
      %p37 = scmp.eq.s32.totalorder %s21, 1
      %p38 = por %p36, %p37
      %p39 = scmp.ne.s32.totalorder %s31, %s34
      %p40 = scmp.eq.s32.totalorder %s21, 0
      %p41 = por %p39, %p40
      %p42 = scmp.ne.s32.totalorder %s31, %s34
      %p43 = scmp.eq.s32.totalorder %s26, 1
      %p44 = por %p42, %p43
      %p45 = scmp.ne.s32.totalorder %s34, %s35
      %p46 = scmp.eq.s32.totalorder %s26, 0
      %p47 = por %p45, %p46
      %p48 = scmp.ne.s32.totalorder %s34, %s35
      %p49 = scmp.eq.s32.totalorder %s27, 1
      %p50 = por %p48, %p49
      %p52 = scmp.ne.s32.totalorder %s35, %s51
      %p53 = scmp.eq.s32.totalorder %s27, 0
      %p54 = por %p52, %p53
      %s55 = ssub.s32 %s21, %s28
      %p56 = scmp.eq.s32.totalorder %s55, 0
      %s58 = sadd.s32 %s57, 1
      %s59 = scalar_select %p56, %s57, %s58
      %p62 = pneg %p56
      %p63 = scmp.eq.s32.totalorder %s21, 1
      %p64 = por %p62, %p63
      %p65 = scmp.ne.s32.totalorder %s57, %s60
      %p66 = scmp.eq.s32.totalorder %s21, 0
      %p67 = por %p65, %p66
      %p68 = scmp.ne.s32.totalorder %s57, %s60
      %p69 = scmp.eq.s32.totalorder %s26, 1
      %p70 = por %p68, %p69
      %p71 = scmp.ne.s32.totalorder %s60, %s61
      %p72 = scmp.eq.s32.totalorder %s26, 0
      %p73 = por %p71, %p72
      %p74 = scmp.ne.s32.totalorder %s60, %s61
      %p75 = scmp.eq.s32.totalorder %s27, 1
      %p76 = por %p74, %p75
      %p78 = scmp.ne.s32.totalorder %s61, %s77
      %p79 = scmp.eq.s32.totalorder %s27, 0
      %p80 = por %p78, %p79
      %s82 = sadd.s32 %s81, 1
      %p85 = scmp.eq.s32.totalorder %s21, 1
      %p86 = scmp.ne.s32.totalorder %s81, %s83
      %p87 = scmp.eq.s32.totalorder %s21, 0
      %p88 = por %p86, %p87
      %p89 = scmp.ne.s32.totalorder %s81, %s83
      %p90 = scmp.eq.s32.totalorder %s26, 1
      %p91 = por %p89, %p90
      %p92 = scmp.ne.s32.totalorder %s83, %s84
      %p93 = scmp.eq.s32.totalorder %s26, 0
      %p94 = por %p92, %p93
      %p95 = scmp.ne.s32.totalorder %s83, %s84
      %p96 = scmp.eq.s32.totalorder %s27, 1
      %p97 = por %p95, %p96
      %p99 = scmp.ne.s32.totalorder %s84, %s98
      %p100 = scmp.eq.s32.totalorder %s27, 0
      %p101 = por %p99, %p100
      %s103 = sadd.s32 %s102, 1
      %p106 = scmp.eq.s32.totalorder %s21, 1
      %p107 = scmp.ne.s32.totalorder %s102, %s104
      %p108 = scmp.eq.s32.totalorder %s21, 0
      %p109 = por %p107, %p108
      %p110 = scmp.ne.s32.totalorder %s102, %s104
      %p111 = scmp.eq.s32.totalorder %s26, 1
      %p112 = por %p110, %p111
      %p113 = scmp.ne.s32.totalorder %s104, %s105
      %p114 = scmp.eq.s32.totalorder %s26, 0
      %p115 = por %p113, %p114
      %p116 = scmp.ne.s32.totalorder %s104, %s105
      %p117 = scmp.eq.s32.totalorder %s27, 1
      %p118 = por %p116, %p117
      %p120 = scmp.ne.s32.totalorder %s105, %s119
      %p121 = scmp.eq.s32.totalorder %s27, 0
      %p122 = por %p120, %p121
      %s124 = sadd.s32 %s123, 1
      %p127 = scmp.eq.s32.totalorder %s21, 1
      %p128 = scmp.ne.s32.totalorder %s123, %s125
      %p129 = scmp.eq.s32.totalorder %s21, 0
      %p130 = por %p128, %p129
      %p131 = scmp.ne.s32.totalorder %s123, %s125
      %p132 = scmp.eq.s32.totalorder %s26, 1
      %p133 = por %p131, %p132
      %p134 = scmp.ne.s32.totalorder %s125, %s126
      %p135 = scmp.eq.s32.totalorder %s26, 0
      %p136 = por %p134, %p135
      %p137 = scmp.ne.s32.totalorder %s125, %s126
      %p138 = scmp.eq.s32.totalorder %s27, 1
      %p139 = por %p137, %p138
      %p141 = scmp.ne.s32.totalorder %s126, %s140
      %p142 = scmp.eq.s32.totalorder %s27, 0
      %p143 = por %p141, %p142
      %s145 = sadd.s32 %s144, 1
      %p148 = scmp.eq.s32.totalorder %s21, 1
      %p149 = scmp.ne.s32.totalorder %s144, %s146
      %p150 = scmp.eq.s32.totalorder %s21, 0
      %p151 = por %p149, %p150
      %p152 = scmp.ne.s32.totalorder %s144, %s146
      %p153 = scmp.eq.s32.totalorder %s26, 1
      %p154 = por %p152, %p153
      %p155 = scmp.ne.s32.totalorder %s146, %s147
      %p156 = scmp.eq.s32.totalorder %s26, 0
      %p157 = por %p155, %p156
      %p158 = scmp.ne.s32.totalorder %s146, %s147
      %p159 = scmp.eq.s32.totalorder %s27, 1
      %p160 = por %p158, %p159
      %p162 = scmp.ne.s32.totalorder %s147, %s161
      %p163 = scmp.eq.s32.totalorder %s27, 0
      %p164 = por %p162, %p163
      %s166 = sadd.s32 %s165, 1
      %p169 = scmp.eq.s32.totalorder %s21, 1
      %p170 = scmp.ne.s32.totalorder %s165, %s167
      %p171 = scmp.eq.s32.totalorder %s21, 0
      %p172 = por %p170, %p171
      %p173 = scmp.ne.s32.totalorder %s165, %s167
      %p174 = scmp.eq.s32.totalorder %s26, 1
      %p175 = por %p173, %p174
      %p176 = scmp.ne.s32.totalorder %s167, %s168
      %p177 = scmp.eq.s32.totalorder %s26, 0
      %p178 = por %p176, %p177
      %p179 = scmp.ne.s32.totalorder %s167, %s168
      %p180 = scmp.eq.s32.totalorder %s27, 1
      %p181 = por %p179, %p180
      %p183 = scmp.ne.s32.totalorder %s168, %s182
      %p184 = scmp.eq.s32.totalorder %s27, 0
      %p185 = por %p183, %p184
      %s187 = sadd.s32 %s186, 1
      %p190 = scmp.eq.s32.totalorder %s21, 1
      %p191 = scmp.ne.s32.totalorder %s186, %s188
      %p192 = scmp.eq.s32.totalorder %s21, 0
      %p193 = por %p191, %p192
      %p194 = scmp.ne.s32.totalorder %s186, %s188
      %p195 = scmp.eq.s32.totalorder %s26, 1
      %p196 = por %p194, %p195
      %p197 = scmp.ne.s32.totalorder %s188, %s189
      %p198 = scmp.eq.s32.totalorder %s26, 0
      %p199 = por %p197, %p198
      %p200 = scmp.ne.s32.totalorder %s188, %s189
      %p201 = scmp.eq.s32.totalorder %s27, 1
      %p202 = por %p200, %p201
      %p204 = scmp.ne.s32.totalorder %s189, %s203
      %p205 = scmp.eq.s32.totalorder %s27, 0
      %p206 = por %p204, %p205
      %s208 = sadd.s32 %s207, 1
      %p211 = scmp.eq.s32.totalorder %s21, 1
      %p212 = scmp.ne.s32.totalorder %s207, %s209
      %p213 = scmp.eq.s32.totalorder %s21, 0
      %p214 = por %p212, %p213
      %p215 = scmp.ne.s32.totalorder %s207, %s209
      %p216 = scmp.eq.s32.totalorder %s26, 1
      %p217 = por %p215, %p216
      %p218 = scmp.ne.s32.totalorder %s209, %s210
      %p219 = scmp.eq.s32.totalorder %s26, 0
      %p220 = por %p218, %p219
      %p221 = scmp.ne.s32.totalorder %s209, %s210
      %p222 = scmp.eq.s32.totalorder %s27, 1
      %p223 = por %p221, %p222
      %p225 = scmp.ne.s32.totalorder %s210, %s224
      %p226 = scmp.eq.s32.totalorder %s27, 0
      %p227 = por %p225, %p226
      %s229 = sadd.s32 %s228, 1
      %p232 = scmp.eq.s32.totalorder %s21, 1
      %p233 = scmp.ne.s32.totalorder %s228, %s230
      %p234 = scmp.eq.s32.totalorder %s21, 0
      %p235 = por %p233, %p234
      %p236 = scmp.ne.s32.totalorder %s228, %s230
      %p237 = scmp.eq.s32.totalorder %s26, 1
      %p238 = por %p236, %p237
      %p239 = scmp.ne.s32.totalorder %s230, %s231
      %p240 = scmp.eq.s32.totalorder %s26, 0
      %p241 = por %p239, %p240
      %p242 = scmp.ne.s32.totalorder %s230, %s231
      %p243 = scmp.eq.s32.totalorder %s27, 1
      %p244 = por %p242, %p243
      %p246 = scmp.ne.s32.totalorder %s231, %s245
      %p247 = scmp.eq.s32.totalorder %s27, 0
      %p248 = por %p246, %p247
      %s250 = sadd.s32 %s249, 1
      %p253 = scmp.eq.s32.totalorder %s21, 1
      %p254 = scmp.ne.s32.totalorder %s249, %s251
      %p255 = scmp.eq.s32.totalorder %s21, 0
      %p256 = por %p254, %p255
      %p257 = scmp.ne.s32.totalorder %s249, %s251
      %p258 = scmp.eq.s32.totalorder %s26, 1
      %p259 = por %p257, %p258
      %p260 = scmp.ne.s32.totalorder %s251, %s252
      %p261 = scmp.eq.s32.totalorder %s26, 0
      %p262 = por %p260, %p261
      %p263 = scmp.ne.s32.totalorder %s251, %s252
      %p264 = scmp.eq.s32.totalorder %s27, 1
      %p265 = por %p263, %p264
      %p267 = scmp.ne.s32.totalorder %s252, %s266
      %p268 = scmp.eq.s32.totalorder %s27, 0
      %p269 = por %p267, %p268
      %s270 = ssub.s32 %s21, %s28
      %p271 = scmp.eq.s32.totalorder %s270, 0
      %s273 = sadd.s32 %s272, 1
      %s274 = scalar_select %p271, %s272, %s273
      %p277 = pneg %p271
      %p278 = scmp.eq.s32.totalorder %s21, 1
      %p279 = por %p277, %p278
      %p280 = scmp.ne.s32.totalorder %s272, %s275
      %p281 = scmp.eq.s32.totalorder %s21, 0
      %p282 = por %p280, %p281
      %p283 = scmp.ne.s32.totalorder %s272, %s275
      %p284 = scmp.eq.s32.totalorder %s26, 1
      %p285 = por %p283, %p284
      %p286 = scmp.ne.s32.totalorder %s275, %s276
      %p287 = scmp.eq.s32.totalorder %s26, 0
      %p288 = por %p286, %p287
      %p289 = scmp.ne.s32.totalorder %s275, %s276
      %p290 = scmp.eq.s32.totalorder %s27, 1
      %p291 = por %p289, %p290
      %p293 = scmp.ne.s32.totalorder %s276, %s292
      %p294 = scmp.eq.s32.totalorder %s27, 0
      %p295 = por %p293, %p294
      %p296 = scmp.le.s32.totalorder 1, %s21
      %p297 = scmp.lt.s32.totalorder %s21, 3
      %p298 = pnand %p296, %p297
      %p299 = pneg %p298
      // Predicated region
      $region9: #{tpu_custom_call.1} parent=5 // pred_check
        _
      $region10: #{tpu_custom_call.1} parent=5 // pred_check_branch
        %301 = sbr.rel (%p298) target = $region12
      $region11: #{tpu_custom_call.1} parent=5 // pred_region
        %s302 = ssub.s32 %s21, 1
        // Predicated region
        $region13: #{tpu_custom_call.1} parent=11 // pred_check
          %p303 = pneg %p94
        $region14: #{tpu_custom_call.1} parent=11 // pred_check_branch
          %305 = sbr.rel (%p303) target = $region16
        $region15: #{tpu_custom_call.1} parent=11 // pred_region
          _
        $region16: #{tpu_custom_call.1} parent=11 // pred_fallthru
          _
        // Predicated region
        $region17: #{tpu_custom_call.1} parent=11 // pred_check
          %p306 = pneg %p115
        $region18: #{tpu_custom_call.1} parent=11 // pred_check_branch
          %308 = sbr.rel (%p306) target = $region20
        $region19: #{tpu_custom_call.1} parent=11 // pred_region
          _
        $region20: #{tpu_custom_call.1} parent=11 // pred_fallthru
          _
        // Predicated region
        $region21: #{tpu_custom_call.1} parent=11 // pred_check
          %p309 = pneg %p136
        $region22: #{tpu_custom_call.1} parent=11 // pred_check_branch
          %311 = sbr.rel (%p309) target = $region24
        $region23: #{tpu_custom_call.1} parent=11 // pred_region
          _
        $region24: #{tpu_custom_call.1} parent=11 // pred_fallthru
          _
        // Predicated region
        $region25: #{tpu_custom_call.1} parent=11 // pred_check
          %p312 = pneg %p157
        $region26: #{tpu_custom_call.1} parent=11 // pred_check_branch
          %314 = sbr.rel (%p312) target = $region28
        $region27: #{tpu_custom_call.1} parent=11 // pred_region
          _
        $region28: #{tpu_custom_call.1} parent=11 // pred_fallthru
          _
        // Predicated region
        $region29: #{tpu_custom_call.1} parent=11 // pred_check
          %p315 = pneg %p178
        $region30: #{tpu_custom_call.1} parent=11 // pred_check_branch
          %317 = sbr.rel (%p315) target = $region32
        $region31: #{tpu_custom_call.1} parent=11 // pred_region
          _
        $region32: #{tpu_custom_call.1} parent=11 // pred_fallthru
          _
        // Predicated region
        $region33: #{tpu_custom_call.1} parent=11 // pred_check
          %p318 = pneg %p199
        $region34: #{tpu_custom_call.1} parent=11 // pred_check_branch
          %320 = sbr.rel (%p318) target = $region36
        $region35: #{tpu_custom_call.1} parent=11 // pred_region
          _
        $region36: #{tpu_custom_call.1} parent=11 // pred_fallthru
          _
        // Predicated region
        $region37: #{tpu_custom_call.1} parent=11 // pred_check
          %p321 = pneg %p220
        $region38: #{tpu_custom_call.1} parent=11 // pred_check_branch
          %323 = sbr.rel (%p321) target = $region40
        $region39: #{tpu_custom_call.1} parent=11 // pred_region
          _
        $region40: #{tpu_custom_call.1} parent=11 // pred_fallthru
          _
        // Predicated region
        $region41: #{tpu_custom_call.1} parent=11 // pred_check
          %p324 = pneg %p241
        $region42: #{tpu_custom_call.1} parent=11 // pred_check_branch
          %326 = sbr.rel (%p324) target = $region44
        $region43: #{tpu_custom_call.1} parent=11 // pred_region
          _
        $region44: #{tpu_custom_call.1} parent=11 // pred_fallthru
          _
        // Predicated region
        $region45: #{tpu_custom_call.1} parent=11 // pred_check
          %p327 = pneg %p262
        $region46: #{tpu_custom_call.1} parent=11 // pred_check_branch
          %329 = sbr.rel (%p327) target = $region48
        $region47: #{tpu_custom_call.1} parent=11 // pred_region
          _
        $region48: #{tpu_custom_call.1} parent=11 // pred_fallthru
          _
      $region12: #{tpu_custom_call.1} parent=5 // pred_fallthru
        _
      %p330 = scmp.lt.s32.totalorder %s21, 2
      // Predicated region
      $region49: #{tpu_custom_call.1} parent=5 // pred_check
        %p331 = pneg %p330
      $region50: #{tpu_custom_call.1} parent=5 // pred_check_branch
        %333 = sbr.rel (%p331) target = $region52
      $region51: #{tpu_custom_call.1} parent=5 // pred_region
        // Predicated region
        $region53: #{tpu_custom_call.1} parent=51 // pred_check
          %p334 = pneg %p41
        $region54: #{tpu_custom_call.1} parent=51 // pred_check_branch
          %336 = sbr.rel (%p334) target = $region56
        $region55: #{tpu_custom_call.1} parent=51 // pred_region
          %p337 = scmp.lt.s32.totalorder %s21, 1
          %s338 = scalar_select %p337, %s21, 1
          %s339 = smul.addr %s338, 8
          %s340 = scalar_lea.vmem %s0, %s339
        $region56: #{tpu_custom_call.1} parent=51 // pred_fallthru
          _
        // Predicated region
        $region57: #{tpu_custom_call.1} parent=51 // pred_check
          %p341 = pneg %p67
        $region58: #{tpu_custom_call.1} parent=51 // pred_check_branch
          %343 = sbr.rel (%p341) target = $region60
        $region59: #{tpu_custom_call.1} parent=51 // pred_region
          %p344 = scmp.lt.s32.totalorder %s21, 1
          %s345 = scalar_select %p344, %s21, 1
          %s346 = smul.addr %s345, 8
          %s347 = scalar_lea.vmem %s1, %s346
        $region60: #{tpu_custom_call.1} parent=51 // pred_fallthru
          _
      $region52: #{tpu_custom_call.1} parent=5 // pred_fallthru
        _
      %p348 = scmp.le.s32.totalorder 1, %s21
      %p349 = scmp.lt.s32.totalorder %s21, 3
      %p350 = pnand %p348, %p349
      %p351 = pneg %p350
      // Predicated region
      $region61: #{tpu_custom_call.1} parent=5 // pred_check
        _
      $region62: #{tpu_custom_call.1} parent=5 // pred_check_branch
        %353 = sbr.rel (%p350) target = $region64
      $region63: #{tpu_custom_call.1} parent=5 // pred_region
        %s354 = ssub.s32 %s21, 1
        %p355 = scmp.lt.s32.totalorder %s26, 1
        %s356 = scalar_select %p355, %s26, 1
        %s357 = smul.addr %s356, 8
        %s358 = scalar_lea.vmem %s0, %s357
        %p359 = pneg %p47
        %p360 = pneg %p44
        %p361 = scmp.lt.s32.totalorder %s26, 1
        %s362 = scalar_select %p361, %s26, 1
        %s363 = smul.addr %s362, 8
        %s364 = scalar_lea.vmem %s1, %s363
        %p365 = pneg %p73
        %p366 = pneg %p70
        %p367 = pneg %p94
        %p368 = pneg %p91
        %p369 = pneg %p115
        %p370 = pneg %p112
        %p371 = pneg %p136
        %p372 = pneg %p133
        %p373 = pneg %p157
        %p374 = pneg %p154
        %p375 = pneg %p178
        %p376 = pneg %p175
        %p377 = pneg %p199
        %p378 = pneg %p196
        %p379 = pneg %p220
        %p380 = pneg %p217
        %p381 = pneg %p241
        %p382 = pneg %p238
        %p383 = pneg %p262
        %p384 = pneg %p259
        %p385 = pneg %p288
        %p386 = pneg %p285
        %s387 = sand.u32 %s275, 1
        %s388 = scalar_lea.sflag [#allocation4], %s387
        %s389 = sand.u32 %s275, 1
        %s390 = scalar_lea.vmem [#allocation3], %s389
        %p391 = scmp.lt.s32.totalorder %s26, 1
        %s392 = scalar_select %p391, %s26, 1
        %s393 = smul.addr %s392, 8
        %s394 = scalar_lea.vmem %s0, %s393
        %p395 = scmp.lt.s32.totalorder %s26, 1
        %s396 = scalar_select %p395, %s26, 1
        %s397 = smul.addr %s396, 8
        %s398 = scalar_lea.vmem %s1, %s397
        %v399 = vld [vmem:[%s2] sm:$0xff]
        %v400 = vld [vmem:[%s2 + $0x8] sm:$0xff]
        %v401 = vld [vmem:[%s2 + $0x10] sm:$0xff]
        %v402 = vld [vmem:[%s2 + $0x18] sm:$0xff]
        %v403 = vld [vmem:[%s394] sm:$0xff]
        %v404 = vld [vmem:[%s3] sm:$0xff]
        %v405 = vld [vmem:[%s3 + $0x8] sm:$0xff]
        %v406 = vld [vmem:[%s3 + $0x10] sm:$0xff]
        %v407 = vld [vmem:[%s3 + $0x18] sm:$0xff]
        %v408 = vld [vmem:[%s398] sm:$0xff]
        %vm409 = vcmask 31744
        %v411 = vsel %vm409, %v404, 0
        %v414 = vsel %vm409, %v405, 0
        %v417 = vsel %vm409, %v406, 0
        %v420 = vsel %vm409, %v407, 0
        %v423 = vsel %vm409, %v408, 0
        %425 = vmatprep.subr.mxu0 0.0
        %426 = vmatpush1.xpose.msra.mxu0 0.0
        %427 = vmatprep.subr.mxu0 0.0
        %428 = vmatpush1.xpose.msra.mxu0 0.0
        %429 = vmatprep.subr.mxu0 0.0
        %430 = vmatpush1.xpose.msra.mxu0 0.0
        %431 = vmatprep.subr.mxu0 0.0
        %432 = vmatpush1.xpose.msra.mxu0 0.0
        %433 = vmatprep.subr.mxu0 0.0
        %434 = vmatpush1.xpose.msra.mxu0 0.0
        %435 = vmatprep.subr.mxu0 0.0
        %436 = vmatpush1.xpose.msra.mxu0 0.0
        %437 = vmatprep.subr.mxu0 0.0
        %438 = vmatpush1.xpose.msra.mxu0 0.0
        %439 = vmatprep.subr.mxu0 0.0
        %440 = vmatpush1.xpose.msra.mxu0 0.0
        %441 = vmatprep.subr.mxu0 0.0
        %442 = vmatpush1.xpose.msra.mxu0 0.0
        %443 = vmatprep.subr.mxu0 0.0
        %444 = vmatpush1.xpose.msra.mxu0 0.0
        %445 = vmatprep.subr.mxu0 0.0
        %446 = vmatpush1.xpose.msra.mxu0 0.0
        %447 = vmatprep.subr.mxu0 0.0
        %448 = vmatpush1.xpose.msra.mxu0 0.0
        %449 = vmatprep.subr.mxu0 0.0
        %450 = vmatpush1.xpose.msra.mxu0 0.0
        %451 = vmatprep.subr.mxu0 0.0
        %452 = vmatpush1.xpose.msra.mxu0 0.0
        %453 = vmatprep.subr.mxu0 0.0
        %454 = vmatpush1.xpose.msra.mxu0 0.0
        %455 = vmatprep.subr.mxu0 0.0
        %456 = vmatpush1.xpose.msra.mxu0 %v423
        %457 = vmatprep.subr.mxu0 0.0
        %458 = vmatpush2.xpose.msra.mxu0 0.0
        %459 = vmatprep.subr.mxu0 0.0
        %460 = vmatpush2.xpose.msra.mxu0 0.0
        %461 = vmatprep.subr.mxu0 0.0
        %462 = vmatpush2.xpose.msra.mxu0 0.0
        %463 = vmatprep.subr.mxu0 0.0
        %464 = vmatpush2.xpose.msra.mxu0 0.0
        %465 = vmatprep.subr.mxu0 0.0
        %466 = vmatpush2.xpose.msra.mxu0 0.0
        %467 = vmatprep.subr.mxu0 0.0
        %468 = vmatpush2.xpose.msra.mxu0 0.0
        %469 = vmatprep.subr.mxu0 0.0
        %470 = vmatpush2.xpose.msra.mxu0 0.0
        %471 = vmatprep.subr.mxu0 0.0
        %472 = vmatpush2.xpose.msra.mxu0 0.0
        %473 = vmatprep.subr.mxu0 0.0
        %474 = vmatpush2.xpose.msra.mxu0 0.0
        %475 = vmatprep.subr.mxu0 0.0
        %476 = vmatpush2.xpose.msra.mxu0 0.0
        %477 = vmatprep.subr.mxu0 0.0
        %478 = vmatpush2.xpose.msra.mxu0 0.0
        %479 = vmatprep.subr.mxu0 0.0
        %480 = vmatpush2.xpose.msra.mxu0 0.0
        %481 = vmatprep.subr.mxu0 0.0
        %482 = vmatpush2.xpose.msra.mxu0 0.0
        %483 = vmatprep.subr.mxu0 0.0
        %484 = vmatpush2.xpose.msra.mxu0 0.0
        %485 = vmatprep.subr.mxu0 0.0
        %486 = vmatpush2.xpose.msra.mxu0 0.0
        %487 = vmatprep.subr.mxu0 0.0
        %488 = vmatpush2.xpose.msra.mxu0 0.0
        %489 = vmatprep.mubr.f32.mxu0 0.0
        %490 = vmatmul.mubr.f32.gmra.mxu0 %v411
        %v491 = vpop.f32.mrf.mxu0
        %v492 = vadd.f32 0.0, %v491
        %v493 = vpop.f32.mrf.mxu0
        %494 = vmatprep.mubr.f32.mxu0 0.0
        %495 = vmatmul.mubr.f32.gmra.mxu0 %v414
        %v496 = vpop.f32.mrf.mxu0
        %v497 = vadd.f32 0.0, %v496
        %v498 = vpop.f32.mrf.mxu0
        %499 = vmatprep.mubr.f32.mxu0 0.0
        %500 = vmatmul.mubr.f32.gmra.mxu0 %v417
        %v501 = vpop.f32.mrf.mxu0
        %v502 = vadd.f32 0.0, %v501
        %v503 = vpop.f32.mrf.mxu0
        %504 = vmatprep.mubr.f32.mxu0 0.0
        %505 = vmatmul.mubr.f32.gmra.mxu0 %v420
        %v506 = vpop.f32.mrf.mxu0
        %v507 = vadd.f32 0.0, %v506
        %v508 = vpop.f32.mrf.mxu0
        %509 = vdwg.mxu0
        %vm510 = vcmask 97280
        %v512 = vsel %vm510, %v399, 0
        %v515 = vsel %vm510, %v400, 0
        %v518 = vsel %vm510, %v401, 0
        %v521 = vsel %vm510, %v402, 0
        %v524 = vsel %vm510, %v403, 0
        %526 = vmatprep.subr.mxu0 0.0
        %527 = vmatpush1.xpose.msra.mxu0 0.0
        %528 = vmatprep.subr.mxu0 0.0
        %529 = vmatpush1.xpose.msra.mxu0 0.0
        %530 = vmatprep.subr.mxu0 0.0
        %531 = vmatpush1.xpose.msra.mxu0 0.0
        %532 = vmatprep.subr.mxu0 0.0
        %533 = vmatpush1.xpose.msra.mxu0 0.0
        %534 = vmatprep.subr.mxu0 0.0
        %535 = vmatpush1.xpose.msra.mxu0 0.0
        %536 = vmatprep.subr.mxu0 0.0
        %537 = vmatpush1.xpose.msra.mxu0 0.0
        %538 = vmatprep.subr.mxu0 0.0
        %539 = vmatpush1.xpose.msra.mxu0 0.0
        %540 = vmatprep.subr.mxu0 0.0
        %541 = vmatpush1.xpose.msra.mxu0 0.0
        %542 = vmatprep.subr.mxu0 0.0
        %543 = vmatpush1.xpose.msra.mxu0 0.0
        %544 = vmatprep.subr.mxu0 0.0
        %545 = vmatpush1.xpose.msra.mxu0 0.0
        %546 = vmatprep.subr.mxu0 0.0
        %547 = vmatpush1.xpose.msra.mxu0 0.0
        %548 = vmatprep.subr.mxu0 0.0
        %549 = vmatpush1.xpose.msra.mxu0 0.0
        %550 = vmatprep.subr.mxu0 0.0
        %551 = vmatpush1.xpose.msra.mxu0 0.0
        %552 = vmatprep.subr.mxu0 0.0
        %553 = vmatpush1.xpose.msra.mxu0 0.0
        %554 = vmatprep.subr.mxu0 0.0
        %555 = vmatpush1.xpose.msra.mxu0 0.0
        %556 = vmatprep.subr.mxu0 0.0
        %557 = vmatpush1.xpose.msra.mxu0 %v524
        %558 = vmatprep.subr.mxu0 0.0
        %559 = vmatpush2.xpose.msra.mxu0 0.0
        %560 = vmatprep.subr.mxu0 0.0
        %561 = vmatpush2.xpose.msra.mxu0 0.0
        %562 = vmatprep.subr.mxu0 0.0
        %563 = vmatpush2.xpose.msra.mxu0 0.0
        %564 = vmatprep.subr.mxu0 0.0
        %565 = vmatpush2.xpose.msra.mxu0 0.0
        %566 = vmatprep.subr.mxu0 0.0
        %567 = vmatpush2.xpose.msra.mxu0 0.0
        %568 = vmatprep.subr.mxu0 0.0
        %569 = vmatpush2.xpose.msra.mxu0 0.0
        %570 = vmatprep.subr.mxu0 0.0
        %571 = vmatpush2.xpose.msra.mxu0 0.0
        %572 = vmatprep.subr.mxu0 0.0
        %573 = vmatpush2.xpose.msra.mxu0 0.0
        %574 = vmatprep.subr.mxu0 0.0
        %575 = vmatpush2.xpose.msra.mxu0 0.0
        %576 = vmatprep.subr.mxu0 0.0
        %577 = vmatpush2.xpose.msra.mxu0 0.0
        %578 = vmatprep.subr.mxu0 0.0
        %579 = vmatpush2.xpose.msra.mxu0 0.0
        %580 = vmatprep.subr.mxu0 0.0
        %581 = vmatpush2.xpose.msra.mxu0 0.0
        %582 = vmatprep.subr.mxu0 0.0
        %583 = vmatpush2.xpose.msra.mxu0 0.0
        %584 = vmatprep.subr.mxu0 0.0
        %585 = vmatpush2.xpose.msra.mxu0 0.0
        %586 = vmatprep.subr.mxu0 0.0
        %587 = vmatpush2.xpose.msra.mxu0 0.0
        %588 = vmatprep.subr.mxu0 0.0
        %589 = vmatpush2.xpose.msra.mxu0 0.0
        %590 = vmatprep.mubr.f32.mxu0 0.0
        %591 = vmatmul.mubr.f32.gmra.mxu0 %v512
        %v592 = vpop.f32.mrf.mxu0
        %v593 = vadd.f32 %v492, %v592
        %v594 = vpop.f32.mrf.mxu0
        %595 = vmatprep.mubr.f32.mxu0 0.0
        %596 = vmatmul.mubr.f32.gmra.mxu0 %v515
        %v597 = vpop.f32.mrf.mxu0
        %v598 = vadd.f32 %v497, %v597
        %v599 = vpop.f32.mrf.mxu0
        %600 = vmatprep.mubr.f32.mxu0 0.0
        %601 = vmatmul.mubr.f32.gmra.mxu0 %v518
        %v602 = vpop.f32.mrf.mxu0
        %v603 = vadd.f32 %v502, %v602
        %v604 = vpop.f32.mrf.mxu0
        %605 = vmatprep.mubr.f32.mxu0 0.0
        %606 = vmatmul.mubr.f32.gmra.mxu0 %v521
        %v607 = vpop.f32.mrf.mxu0
        %v608 = vadd.f32 %v507, %v607
        %v609 = vpop.f32.mrf.mxu0
        %610 = vdwg.mxu0
        %v611 = vld [vmem:[%s4] sm:$0xff]
        %v612 = vld [vmem:[%s4 + $0x8] sm:$0xff]
        %v613 = vld [vmem:[%s4 + $0x10] sm:$0xff]
        %v614 = vld [vmem:[%s4 + $0x18] sm:$0xff]
        %616 = vset.pattern.permute.xlu0 0
        %617 = vperm.xlu0 %616, %v611
        %v618 = vpop.permute.xlu0 %617
        %621 = vset.pattern.permute.xlu0 0
        %622 = vperm.xlu0 %621, %v612
        %v623 = vpop.permute.xlu0 %622
        %626 = vset.pattern.permute.xlu0 0
        %627 = vperm.xlu0 %626, %v613
        %v628 = vpop.permute.xlu0 %627
        %631 = vset.pattern.permute.xlu0 0
        %632 = vperm.xlu0 %631, %v614
        %v633 = vpop.permute.xlu0 %632
        %v635 = vadd.f32 %v593, %v618
        %v636 = vadd.f32 %v598, %v623
        %v637 = vadd.f32 %v603, %v628
        %v638 = vadd.f32 %v608, %v633
        %v639 = vmax.f32 %v635, 0.0
        %v640 = vmax.f32 %v636, 0.0
        %v641 = vmax.f32 %v637, 0.0
        %v642 = vmax.f32 %v638, 0.0
        %v643 = vld [vmem:[%s5] sm:$0xff]
        %v644 = vld [vmem:[%s5 + $0x8] sm:$0xff]
        %v645 = vld [vmem:[%s5 + $0x10] sm:$0xff]
        %v646 = vld [vmem:[%s5 + $0x18] sm:$0xff]
        %v647 = vld [vmem:[%s6] sm:$0xff]
        %v648 = vld [vmem:[%s6 + $0x8] sm:$0xff]
        %v649 = vld [vmem:[%s6 + $0x10] sm:$0xff]
        %v650 = vld [vmem:[%s6 + $0x18] sm:$0xff]
        %652 = vset.pattern.permute.xlu0 0
        %653 = vperm.xlu0 %652, %v647
        %v654 = vpop.permute.xlu0 %653
        %657 = vset.pattern.permute.xlu0 0
        %658 = vperm.xlu0 %657, %v648
        %v659 = vpop.permute.xlu0 %658
        %662 = vset.pattern.permute.xlu0 0
        %663 = vperm.xlu0 %662, %v649
        %v664 = vpop.permute.xlu0 %663
        %667 = vset.pattern.permute.xlu0 0
        %668 = vperm.xlu0 %667, %v650
        %v669 = vpop.permute.xlu0 %668
        %vm671 = vcmask 261120
        %v673 = vsel %vm671, %v643, 0
        %v676 = vsel %vm671, %v644, 0
        %v679 = vsel %vm671, %v645, 0
        %v682 = vsel %vm671, %v646, 0
        %684 = vmatprep.subr.mxu0 0.0
        %685 = vmatpush1.msra.mxu0 0.0
        %686 = vmatprep.subr.mxu0 0.0
        %687 = vmatpush1.msra.mxu0 0.0
        %688 = vmatprep.subr.mxu0 0.0
        %689 = vmatpush1.msra.mxu0 0.0
        %690 = vmatprep.subr.mxu0 0.0
        %691 = vmatpush1.msra.mxu0 0.0
        %692 = vmatprep.subr.mxu0 0.0
        %693 = vmatpush1.msra.mxu0 0.0
        %694 = vmatprep.subr.mxu0 0.0
        %695 = vmatpush1.msra.mxu0 0.0
        %696 = vmatprep.subr.mxu0 0.0
        %697 = vmatpush1.msra.mxu0 0.0
        %698 = vmatprep.subr.mxu0 0.0
        %699 = vmatpush1.msra.mxu0 0.0
        %700 = vmatprep.subr.mxu0 0.0
        %701 = vmatpush1.msra.mxu0 0.0
        %702 = vmatprep.subr.mxu0 0.0
        %703 = vmatpush1.msra.mxu0 0.0
        %704 = vmatprep.subr.mxu0 0.0
        %705 = vmatpush1.msra.mxu0 0.0
        %706 = vmatprep.subr.mxu0 0.0
        %707 = vmatpush1.msra.mxu0 0.0
        %708 = vmatprep.subr.mxu0 0.0
        %709 = vmatpush1.msra.mxu0 %v642
        %710 = vmatprep.subr.mxu0 0.0
        %711 = vmatpush1.msra.mxu0 %v641
        %712 = vmatprep.subr.mxu0 0.0
        %713 = vmatpush1.msra.mxu0 %v640
        %714 = vmatprep.subr.mxu0 0.0
        %715 = vmatpush1.msra.mxu0 %v639
        %716 = vmatprep.subr.mxu0 0.0
        %717 = vmatpush2.msra.mxu0 0.0
        %718 = vmatprep.subr.mxu0 0.0
        %719 = vmatpush2.msra.mxu0 0.0
        %720 = vmatprep.subr.mxu0 0.0
        %721 = vmatpush2.msra.mxu0 0.0
        %722 = vmatprep.subr.mxu0 0.0
        %723 = vmatpush2.msra.mxu0 0.0
        %724 = vmatprep.subr.mxu0 0.0
        %725 = vmatpush2.msra.mxu0 0.0
        %726 = vmatprep.subr.mxu0 0.0
        %727 = vmatpush2.msra.mxu0 0.0
        %728 = vmatprep.subr.mxu0 0.0
        %729 = vmatpush2.msra.mxu0 0.0
        %730 = vmatprep.subr.mxu0 0.0
        %731 = vmatpush2.msra.mxu0 0.0
        %732 = vmatprep.subr.mxu0 0.0
        %733 = vmatpush2.msra.mxu0 0.0
        %734 = vmatprep.subr.mxu0 0.0
        %735 = vmatpush2.msra.mxu0 0.0
        %736 = vmatprep.subr.mxu0 0.0
        %737 = vmatpush2.msra.mxu0 0.0
        %738 = vmatprep.subr.mxu0 0.0
        %739 = vmatpush2.msra.mxu0 0.0
        %740 = vmatprep.subr.mxu0 0.0
        %741 = vmatpush2.msra.mxu0 0.0
        %742 = vmatprep.subr.mxu0 0.0
        %743 = vmatpush2.msra.mxu0 0.0
        %744 = vmatprep.subr.mxu0 0.0
        %745 = vmatpush2.msra.mxu0 0.0
        %746 = vmatprep.subr.mxu0 0.0
        %747 = vmatpush2.msra.mxu0 0.0
        %748 = vmatprep.mubr.f32.mxu0 0.0
        %749 = vmatmul.mubr.f32.gmra.mxu0 %v673
        %v750 = vpop.f32.mrf.mxu0
        %v751 = vadd.f32 %v654, %v750
        %v752 = vpop.f32.mrf.mxu0
        %753 = vmatprep.mubr.f32.mxu0 0.0
        %754 = vmatmul.mubr.f32.gmra.mxu0 %v676
        %v755 = vpop.f32.mrf.mxu0
        %v756 = vadd.f32 %v659, %v755
        %v757 = vpop.f32.mrf.mxu0
        %758 = vmatprep.mubr.f32.mxu0 0.0
        %759 = vmatmul.mubr.f32.gmra.mxu0 %v679
        %v760 = vpop.f32.mrf.mxu0
        %v761 = vadd.f32 %v664, %v760
        %v762 = vpop.f32.mrf.mxu0
        %763 = vmatprep.mubr.f32.mxu0 0.0
        %764 = vmatmul.mubr.f32.gmra.mxu0 %v682
        %v765 = vpop.f32.mrf.mxu0
        %v766 = vadd.f32 %v669, %v765
        %v767 = vpop.f32.mrf.mxu0
        %768 = vdwg.mxu0
        %v769 = vmax.f32 %v751, 0.0
        %v770 = vmax.f32 %v756, 0.0
        %v771 = vmax.f32 %v761, 0.0
        %v772 = vmax.f32 %v766, 0.0
        %v773 = vld [vmem:[%s7] sm:$0xff]
        %v774 = vld [vmem:[%s7 + $0x8] sm:$0xff]
        %v775 = vld [vmem:[%s7 + $0x10] sm:$0xff]
        %v776 = vld [vmem:[%s7 + $0x18] sm:$0xff]
        %v777 = vld [vmem:[%s8] sm:$0xff]
        %v778 = vld [vmem:[%s8 + $0x8] sm:$0xff]
        %v779 = vld [vmem:[%s8 + $0x10] sm:$0xff]
        %v780 = vld [vmem:[%s8 + $0x18] sm:$0xff]
        %782 = vset.pattern.permute.xlu0 0
        %783 = vperm.xlu0 %782, %v777
        %v784 = vpop.permute.xlu0 %783
        %787 = vset.pattern.permute.xlu0 0
        %788 = vperm.xlu0 %787, %v778
        %v789 = vpop.permute.xlu0 %788
        %792 = vset.pattern.permute.xlu0 0
        %793 = vperm.xlu0 %792, %v779
        %v794 = vpop.permute.xlu0 %793
        %797 = vset.pattern.permute.xlu0 0
        %798 = vperm.xlu0 %797, %v780
        %v799 = vpop.permute.xlu0 %798
        %v802 = vsel %vm671, %v773, 0
        %v805 = vsel %vm671, %v774, 0
        %v808 = vsel %vm671, %v775, 0
        %v811 = vsel %vm671, %v776, 0
        %813 = vmatprep.subr.mxu0 0.0
        %814 = vmatpush1.msra.mxu0 0.0
        %815 = vmatprep.subr.mxu0 0.0
        %816 = vmatpush1.msra.mxu0 0.0
        %817 = vmatprep.subr.mxu0 0.0
        %818 = vmatpush1.msra.mxu0 0.0
        %819 = vmatprep.subr.mxu0 0.0
        %820 = vmatpush1.msra.mxu0 0.0
        %821 = vmatprep.subr.mxu0 0.0
        %822 = vmatpush1.msra.mxu0 0.0
        %823 = vmatprep.subr.mxu0 0.0
        %824 = vmatpush1.msra.mxu0 0.0
        %825 = vmatprep.subr.mxu0 0.0
        %826 = vmatpush1.msra.mxu0 0.0
        %827 = vmatprep.subr.mxu0 0.0
        %828 = vmatpush1.msra.mxu0 0.0
        %829 = vmatprep.subr.mxu0 0.0
        %830 = vmatpush1.msra.mxu0 0.0
        %831 = vmatprep.subr.mxu0 0.0
        %832 = vmatpush1.msra.mxu0 0.0
        %833 = vmatprep.subr.mxu0 0.0
        %834 = vmatpush1.msra.mxu0 0.0
        %835 = vmatprep.subr.mxu0 0.0
        %836 = vmatpush1.msra.mxu0 0.0
        %837 = vmatprep.subr.mxu0 0.0
        %838 = vmatpush1.msra.mxu0 %v772
        %839 = vmatprep.subr.mxu0 0.0
        %840 = vmatpush1.msra.mxu0 %v771
        %841 = vmatprep.subr.mxu0 0.0
        %842 = vmatpush1.msra.mxu0 %v770
        %843 = vmatprep.subr.mxu0 0.0
        %844 = vmatpush1.msra.mxu0 %v769
        %845 = vmatprep.subr.mxu0 0.0
        %846 = vmatpush2.msra.mxu0 0.0
        %847 = vmatprep.subr.mxu0 0.0
        %848 = vmatpush2.msra.mxu0 0.0
        %849 = vmatprep.subr.mxu0 0.0
        %850 = vmatpush2.msra.mxu0 0.0
        %851 = vmatprep.subr.mxu0 0.0
        %852 = vmatpush2.msra.mxu0 0.0
        %853 = vmatprep.subr.mxu0 0.0
        %854 = vmatpush2.msra.mxu0 0.0
        %855 = vmatprep.subr.mxu0 0.0
        %856 = vmatpush2.msra.mxu0 0.0
        %857 = vmatprep.subr.mxu0 0.0
        %858 = vmatpush2.msra.mxu0 0.0
        %859 = vmatprep.subr.mxu0 0.0
        %860 = vmatpush2.msra.mxu0 0.0
        %861 = vmatprep.subr.mxu0 0.0
        %862 = vmatpush2.msra.mxu0 0.0
        %863 = vmatprep.subr.mxu0 0.0
        %864 = vmatpush2.msra.mxu0 0.0
        %865 = vmatprep.subr.mxu0 0.0
        %866 = vmatpush2.msra.mxu0 0.0
        %867 = vmatprep.subr.mxu0 0.0
        %868 = vmatpush2.msra.mxu0 0.0
        %869 = vmatprep.subr.mxu0 0.0
        %870 = vmatpush2.msra.mxu0 0.0
        %871 = vmatprep.subr.mxu0 0.0
        %872 = vmatpush2.msra.mxu0 0.0
        %873 = vmatprep.subr.mxu0 0.0
        %874 = vmatpush2.msra.mxu0 0.0
        %875 = vmatprep.subr.mxu0 0.0
        %876 = vmatpush2.msra.mxu0 0.0
        %877 = vmatprep.mubr.f32.mxu0 0.0
        %878 = vmatmul.mubr.f32.gmra.mxu0 %v802
        %v879 = vpop.f32.mrf.mxu0
        %v880 = vadd.f32 %v784, %v879
        %v881 = vpop.f32.mrf.mxu0
        %882 = vmatprep.mubr.f32.mxu0 0.0
        %883 = vmatmul.mubr.f32.gmra.mxu0 %v805
        %v884 = vpop.f32.mrf.mxu0
        %v885 = vadd.f32 %v789, %v884
        %v886 = vpop.f32.mrf.mxu0
        %887 = vmatprep.mubr.f32.mxu0 0.0
        %888 = vmatmul.mubr.f32.gmra.mxu0 %v808
        %v889 = vpop.f32.mrf.mxu0
        %v890 = vadd.f32 %v794, %v889
        %v891 = vpop.f32.mrf.mxu0
        %892 = vmatprep.mubr.f32.mxu0 0.0
        %893 = vmatmul.mubr.f32.gmra.mxu0 %v811
        %v894 = vpop.f32.mrf.mxu0
        %v895 = vadd.f32 %v799, %v894
        %v896 = vpop.f32.mrf.mxu0
        %897 = vdwg.mxu0
        %v898 = vadd.f32 %v880, 3.0
        %v899 = vadd.f32 %v885, 3.0
        %v900 = vadd.f32 %v890, 3.0
        %v901 = vadd.f32 %v895, 3.0
        %v902 = vmax.f32 %v898, 0.0
        %v903 = vmax.f32 %v899, 0.0
        %v904 = vmax.f32 %v900, 0.0
        %v905 = vmax.f32 %v901, 0.0
        %v906 = vmin.f32 %v902, 6.0
        %v907 = vmin.f32 %v903, 6.0
        %v908 = vmin.f32 %v904, 6.0
        %v909 = vmin.f32 %v905, 6.0
        %v910 = vmul.f32 %v880, %v906
        %v911 = vmul.f32 %v885, %v907
        %v912 = vmul.f32 %v890, %v908
        %v913 = vmul.f32 %v895, %v909
        %v914 = vmul.f32 %v910, 0.16666667
        %v915 = vmul.f32 %v911, 0.16666667
        %v916 = vmul.f32 %v912, 0.16666667
        %v917 = vmul.f32 %v913, 0.16666667
        %v918 = vld [vmem:[%s9] sm:$0x1]
        %s919 = sld [smem:[#allocation2]]
        %v920 = vstv %s919
        %v922 = vsel %vm671, %v918, 0
        %924 = vmatprep.subr.mxu0 0.0
        %925 = vmatpush1.msra.mxu0 0.0
        %926 = vmatprep.subr.mxu0 0.0
        %927 = vmatpush1.msra.mxu0 0.0
        %928 = vmatprep.subr.mxu0 0.0
        %929 = vmatpush1.msra.mxu0 0.0
        %930 = vmatprep.subr.mxu0 0.0
        %931 = vmatpush1.msra.mxu0 0.0
        %932 = vmatprep.subr.mxu0 0.0
        %933 = vmatpush1.msra.mxu0 0.0
        %934 = vmatprep.subr.mxu0 0.0
        %935 = vmatpush1.msra.mxu0 0.0
        %936 = vmatprep.subr.mxu0 0.0
        %937 = vmatpush1.msra.mxu0 0.0
        %938 = vmatprep.subr.mxu0 0.0
        %939 = vmatpush1.msra.mxu0 0.0
        %940 = vmatprep.subr.mxu0 0.0
        %941 = vmatpush1.msra.mxu0 0.0
        %942 = vmatprep.subr.mxu0 0.0
        %943 = vmatpush1.msra.mxu0 0.0
        %944 = vmatprep.subr.mxu0 0.0
        %945 = vmatpush1.msra.mxu0 0.0
        %946 = vmatprep.subr.mxu0 0.0
        %947 = vmatpush1.msra.mxu0 0.0
        %948 = vmatprep.subr.mxu0 0.0
        %949 = vmatpush1.msra.mxu0 %v917
        %950 = vmatprep.subr.mxu0 0.0
        %951 = vmatpush1.msra.mxu0 %v916
        %952 = vmatprep.subr.mxu0 0.0
        %953 = vmatpush1.msra.mxu0 %v915
        %954 = vmatprep.subr.mxu0 0.0
        %955 = vmatpush1.msra.mxu0 %v914
        %956 = vmatprep.subr.mxu0 0.0
        %957 = vmatpush2.msra.mxu0 0.0
        %958 = vmatprep.subr.mxu0 0.0
        %959 = vmatpush2.msra.mxu0 0.0
        %960 = vmatprep.subr.mxu0 0.0
        %961 = vmatpush2.msra.mxu0 0.0
        %962 = vmatprep.subr.mxu0 0.0
        %963 = vmatpush2.msra.mxu0 0.0
        %964 = vmatprep.subr.mxu0 0.0
        %965 = vmatpush2.msra.mxu0 0.0
        %966 = vmatprep.subr.mxu0 0.0
        %967 = vmatpush2.msra.mxu0 0.0
        %968 = vmatprep.subr.mxu0 0.0
        %969 = vmatpush2.msra.mxu0 0.0
        %970 = vmatprep.subr.mxu0 0.0
        %971 = vmatpush2.msra.mxu0 0.0
        %972 = vmatprep.subr.mxu0 0.0
        %973 = vmatpush2.msra.mxu0 0.0
        %974 = vmatprep.subr.mxu0 0.0
        %975 = vmatpush2.msra.mxu0 0.0
        %976 = vmatprep.subr.mxu0 0.0
        %977 = vmatpush2.msra.mxu0 0.0
        %978 = vmatprep.subr.mxu0 0.0
        %979 = vmatpush2.msra.mxu0 0.0
        %980 = vmatprep.subr.mxu0 0.0
        %981 = vmatpush2.msra.mxu0 0.0
        %982 = vmatprep.subr.mxu0 0.0
        %983 = vmatpush2.msra.mxu0 0.0
        %984 = vmatprep.subr.mxu0 0.0
        %985 = vmatpush2.msra.mxu0 0.0
        %986 = vmatprep.subr.mxu0 0.0
        %987 = vmatpush2.msra.mxu0 0.0
        %988 = vmatprep.mubr.f32.mxu0 0.0
        %989 = vmatmul.mubr.f32.gmra.mxu0 %v922
        %v990 = vpop.f32.mrf.mxu0
        %v991 = vadd.f32 %v920, %v990
        %v992 = vpop.f32.mrf.mxu0
        %993 = vdwg.mxu0
        %vm994 = vcmask 57344
        %995 = vst.msk [vmem:[%s390] sm:$0x1] %vm994, %v991
        %s996 = sand.u32 %s275, 1
        %s997 = scalar_lea.sflag [#allocation4], %s996
        %s998 = sand.u32 %s275, 1
        %s999 = scalar_lea.vmem [#allocation3], %s998
        // Predicated region
        $region65: #{tpu_custom_call.1} parent=63 // pred_check
          %p1000 = pneg %p285
        $region66: #{tpu_custom_call.1} parent=63 // pred_check_branch
          %1002 = sbr.rel (%p1000) target = $region68
        $region67: #{tpu_custom_call.1} parent=63 // pred_region
          %s1004 = ssub.s32 16, 16
          %1005 = vsyncadd %s997, %s1004
          %s1006 = smul.addr %s26, 16
          %s1007 = scalar_lea.hbm %s11, %s1006
          %s1009 = sshll.u32 %s999, 4
          %s1010 = int_to_ptr.vmem [resolvable:$true] %s1009
          %1012 = dma.vmem_to_hbm [thread:$0]  %s1010, 16, %s1007, %s997
        $region68: #{tpu_custom_call.1} parent=63 // pred_fallthru
          _
      $region64: #{tpu_custom_call.1} parent=5 // pred_fallthru
        _
      %p1013 = scmp.le.s32.totalorder 2, %s21
      // Predicated region
      $region69: #{tpu_custom_call.1} parent=5 // pred_check
        %p1014 = pneg %p1013
      $region70: #{tpu_custom_call.1} parent=5 // pred_check_branch
        %1016 = sbr.rel (%p1014) target = $region72
      $region71: #{tpu_custom_call.1} parent=5 // pred_region
        %s1017 = ssub.s32 %s21, 2
        // Predicated region
        $region73: #{tpu_custom_call.1} parent=71 // pred_check
          %p1018 = pneg %p291
        $region74: #{tpu_custom_call.1} parent=71 // pred_check_branch
          %1020 = sbr.rel (%p1018) target = $region76
        $region75: #{tpu_custom_call.1} parent=71 // pred_region
          %s1021 = sand.u32 %s276, 1
          %s1022 = scalar_lea.sflag [#allocation4], %s1021
          %s1023 = sand.u32 %s276, 1
          %s1024 = scalar_lea.vmem [#allocation3], %s1023
          %1025 = dma.done %s1022, 16
        $region76: #{tpu_custom_call.1} parent=71 // pred_fallthru
          _
      $region72: #{tpu_custom_call.1} parent=5 // pred_fallthru
        _
    $region6: #{tpu_custom_call.1} parent=1 // loop_footer
      %s25 = sadd.s32 1, %s21
    $region7: #{tpu_custom_call.1} parent=1 // loop_footer_branch
      %20 = sbr.rel target = $region3
    $region8: #{tpu_custom_call.1} parent=1 // loop_exit
      _
    %1026 = vsyncpa [#allocation4], 1
    %s1027 = scalar_lea.sflag [#allocation4], 1
    %1028 = vsyncpa %s1027, 1

</llo_original>
